<compile_context>
chip_gen: v5e
topology: v5e:2x2
jax: 0.10.0
libtpu: 0.0.40
codegen_flags: <defaults>
</compile_context>

<pallas_src>
import functools
import math

import jax
import jax.numpy as jnp
from jax.experimental import pallas as pl
from jax.experimental.pallas import tpu as pltpu


_VMEM_LIMIT = 32 * 1024 * 1024  # safe scoped-VMEM budget on v5e/v6e/v7x


def _pick_tile(dim, target):
    """Largest-safe tile: use `target` if it evenly divides, else the full extent."""
    if dim <= target:
        return dim
    if dim % target == 0:
        return target
    return dim


# ---------------------------------------------------------------------------
# Kernel 1: tiled linear (QKV projection)  y = x @ W + b
# ---------------------------------------------------------------------------

def _matmul_bias_kernel(x_ref, w_ref, b_ref, o_ref, acc_ref, *, activation=None):
    k = pl.program_id(2)

    @pl.when(k == 0)
    def _():
        acc_ref[...] = jnp.zeros_like(acc_ref)

    acc_ref[...] += jnp.dot(x_ref[...].astype(jnp.bfloat16), w_ref[...],
                            preferred_element_type=jnp.float32)

    @pl.when(k == pl.num_programs(2) - 1)
    def _():
        y = acc_ref[...] + b_ref[...]
        if activation == "relu":
            y = jnp.maximum(y, 0.0)
        o_ref[...] = y.astype(o_ref.dtype)


def linear(x, w_bf16, b, *, out_dtype=jnp.float32, activation=None,
           tm=256, tn=256, tk=512):
    """x:(M,K) bf16/f32, w:(K,N) bf16, b:(N,) f32 -> (M,N) out_dtype. Tiled + pipelined."""
    M, K = x.shape
    N = w_bf16.shape[1]
    tm, tn, tk = _pick_tile(M, tm), _pick_tile(N, tn), _pick_tile(K, tk)
    kern = functools.partial(_matmul_bias_kernel, activation=activation)
    return pl.pallas_call(
        kern,
        out_shape=jax.ShapeDtypeStruct((M, N), out_dtype),
        grid=(M // tm, N // tn, K // tk),
        in_specs=[
            pl.BlockSpec((tm, tk), lambda i, j, k: (i, k)),
            pl.BlockSpec((tk, tn), lambda i, j, k: (k, j)),
            pl.BlockSpec((1, tn), lambda i, j, k: (0, j)),
        ],
        out_specs=pl.BlockSpec((tm, tn), lambda i, j, k: (i, j)),
        scratch_shapes=[pltpu.VMEM((tm, tn), jnp.float32)],
        compiler_params=pltpu.CompilerParams(
            dimension_semantics=("parallel", "parallel", "arbitrary"),
            vmem_limit_bytes=_VMEM_LIMIT),
    )(x, w_bf16, b.reshape(1, N).astype(jnp.float32))


# ---------------------------------------------------------------------------
# Kernel 2: fused attention + out_proj + residual + LayerNorm1 (one batch / step)
# ---------------------------------------------------------------------------

def _attn_block_kernel(qkv_ref, bias_ref, xres_ref, wo_ref, bo_ref, g1_ref, be1_ref,
                       y_ref, w_ref, *, nhead, eps):
    S = qkv_ref.shape[1]
    E = qkv_ref.shape[2] // 3
    H = nhead
    D = E // H

    qkv = qkv_ref[0]            # (S, 3E) bf16; 1/sqrt(D) already folded into Q columns
    bias_row = bias_ref[0]      # (1, S)  f32 additive key-padding bias

    w_acc = jnp.zeros((S, S), jnp.float32)   # head-summed attention probs
    o_acc = jnp.zeros((S, E), jnp.float32)   # out_proj accumulator (avoids (S,E) concat copy)
    for h in range(H):          # static per-head loop; all slices stay in VMEM
        qh = qkv[:, h * D:(h + 1) * D]
        kh = qkv[:, E + h * D:E + (h + 1) * D]
        vh = qkv[:, 2 * E + h * D:2 * E + (h + 1) * D]

        # contract D directly (no explicit K transpose): (S,S) f32 scores
        s = jax.lax.dot_general(qh, kh, (((1,), (1,)), ((), ())),
                                preferred_element_type=jnp.float32)
        s = s + bias_row

        m = jnp.max(s, axis=-1, keepdims=True)
        e = jnp.exp(s - m)
        denom = jnp.sum(e, axis=-1, keepdims=True)
        p = e * pl.reciprocal(denom, approx=True)        # softmax probs (S,S)

        w_acc = w_acc + p
        ctx_h = jnp.dot(p.astype(jnp.bfloat16), vh,
                        preferred_element_type=jnp.float32)              # (S,D)
        # per-head slice of out_proj: contribution ctx_h @ W_o[hD:(h+1)D, :]
        o_acc = o_acc + jnp.dot(ctx_h.astype(jnp.bfloat16),
                                wo_ref[h * D:(h + 1) * D, :],
                                preferred_element_type=jnp.float32)       # (S,E)

    # head-averaged attention weights (PyTorch average_attn_weights=True)
    w_ref[0] = w_acc * (1.0 / H)

    # out_proj bias + residual + LayerNorm1 epilogue (f32)
    y = xres_ref[0] + o_acc + bo_ref[...]
    mean = jnp.mean(y, axis=-1, keepdims=True)
    var = jnp.mean((y - mean) * (y - mean), axis=-1, keepdims=True)
    y_ref[0] = ((y - mean) * jax.lax.rsqrt(var + eps)) * g1_ref[...] + be1_ref[...]


def attention_block(qkv, bias, x_res, w_o, b_o, gamma, beta, *, nhead, eps=1e-5):
    """qkv:(B,S,3E) bf16, bias:(B,1,S) f32, x_res:(B,S,E) f32 -> (y1:(B,S,E) f32, attn:(B,S,S) f32)."""
    B, S, E3 = qkv.shape
    E = E3 // 3
    kern = functools.partial(_attn_block_kernel, nhead=nhead, eps=eps)
    return pl.pallas_call(
        kern,
        out_shape=(jax.ShapeDtypeStruct((B, S, E), jnp.float32),
                   jax.ShapeDtypeStruct((B, S, S), jnp.float32)),
        grid=(B,),
        in_specs=[
            pl.BlockSpec((1, S, E3), lambda b: (b, 0, 0)),   # qkv (lane-dense)
            pl.BlockSpec((1, 1, S), lambda b: (b, 0, 0)),    # tiny padding bias
            pl.BlockSpec((1, S, E), lambda b: (b, 0, 0)),    # residual stream
            pl.BlockSpec((E, E), lambda b: (0, 0)),          # out_proj W (resident)
            pl.BlockSpec((1, E), lambda b: (0, 0)),
            pl.BlockSpec((1, E), lambda b: (0, 0)),
            pl.BlockSpec((1, E), lambda b: (0, 0)),
        ],
        out_specs=(
            pl.BlockSpec((1, S, E), lambda b: (b, 0, 0)),
            pl.BlockSpec((1, S, S), lambda b: (b, 0, 0)),
        ),
        compiler_params=pltpu.CompilerParams(
            dimension_semantics=("parallel",),
            vmem_limit_bytes=_VMEM_LIMIT),
    )(qkv, bias, x_res, w_o,
      b_o.reshape(1, E).astype(jnp.float32),
      gamma.reshape(1, E).astype(jnp.float32),
      beta.reshape(1, E).astype(jnp.float32))


# ---------------------------------------------------------------------------
# Kernel 3: fused FFN (linear1 -> ReLU -> linear2) + residual + LayerNorm2
# ---------------------------------------------------------------------------

def _ffn_ln_kernel(x_ref, w1_ref, b1_ref, w2_ref, b2_ref, g_ref, be_ref, o_ref, *, eps):
    x = x_ref[...]                                              # (tm, E) f32
    h = jnp.dot(x.astype(jnp.bfloat16), w1_ref[...],
                preferred_element_type=jnp.float32) + b1_ref[...]
    h = jnp.maximum(h, 0.0)                                     # (tm, FF) stays in VMEM
    f = jnp.dot(h.astype(jnp.bfloat16), w2_ref[...],
                preferred_element_type=jnp.float32) + b2_ref[...]
    y = x + f
    mean = jnp.mean(y, axis=-1, keepdims=True)
    var = jnp.mean((y - mean) * (y - mean), axis=-1, keepdims=True)
    o_ref[...] = ((y - mean) * jax.lax.rsqrt(var + eps)) * g_ref[...] + be_ref[...]


def ffn_block(x, w1, b1, w2, b2, gamma, beta, *, eps=1e-5, tm=256):
    M, E = x.shape
    FF = w1.shape[1]
    tm = _pick_tile(M, tm)
    kern = functools.partial(_ffn_ln_kernel, eps=eps)
    return pl.pallas_call(
        kern,
        out_shape=jax.ShapeDtypeStruct((M, E), jnp.float32),
        grid=(M // tm,),
        in_specs=[
            pl.BlockSpec((tm, E), lambda i: (i, 0)),
            pl.BlockSpec((E, FF), lambda i: (0, 0)),
            pl.BlockSpec((1, FF), lambda i: (0, 0)),
            pl.BlockSpec((FF, E), lambda i: (0, 0)),
            pl.BlockSpec((1, E), lambda i: (0, 0)),
            pl.BlockSpec((1, E), lambda i: (0, 0)),
            pl.BlockSpec((1, E), lambda i: (0, 0)),
        ],
        out_specs=pl.BlockSpec((tm, E), lambda i: (i, 0)),
        compiler_params=pltpu.CompilerParams(
            dimension_semantics=("parallel",),
            vmem_limit_bytes=_VMEM_LIMIT),
    )(x, w1, b1.reshape(1, FF).astype(jnp.float32), w2,
      b2.reshape(1, E).astype(jnp.float32),
      gamma.reshape(1, E).astype(jnp.float32),
      beta.reshape(1, E).astype(jnp.float32))


# ---------------------------------------------------------------------------
# TransformerEncoderLayer forward
# ---------------------------------------------------------------------------

def init_params(key, embed_dim, nhead, dim_feedforward):
    ks = jax.random.split(key, 4)
    std = 0.02
    # weights stored as (in, out) so kernels compute x @ W + b
    return dict(
        in_proj_w=std * jax.random.normal(ks[0], (embed_dim, 3 * embed_dim), jnp.float32),
        in_proj_b=jnp.zeros((3 * embed_dim,), jnp.float32),
        out_proj_w=std * jax.random.normal(ks[1], (embed_dim, embed_dim), jnp.float32),
        out_proj_b=jnp.zeros((embed_dim,), jnp.float32),
        linear1_w=std * jax.random.normal(ks[2], (embed_dim, dim_feedforward), jnp.float32),
        linear1_b=jnp.zeros((dim_feedforward,), jnp.float32),
        linear2_w=std * jax.random.normal(ks[3], (dim_feedforward, embed_dim), jnp.float32),
        linear2_b=jnp.zeros((embed_dim,), jnp.float32),
        norm1_g=jnp.ones((embed_dim,), jnp.float32),
        norm1_b=jnp.zeros((embed_dim,), jnp.float32),
        norm2_g=jnp.ones((embed_dim,), jnp.float32),
        norm2_b=jnp.zeros((embed_dim,), jnp.float32),
    )


def transformer_encoder_layer(src, key_padding_mask, params, nhead, eps=1e-5):
    S, B, E = src.shape
    M = B * S
    D = E // nhead

    # batch-first internal layout; the flat residual stream never gets transposed again
    xb = jnp.transpose(src, (1, 0, 2))          # (B, S, E) f32 (residual stream)
    x = xb.reshape(M, E)

    # fold 1/sqrt(D) into the Q projection weights/bias (one-time weight op, no runtime scaling)
    scale = 1.0 / math.sqrt(D)
    col_scale = jnp.concatenate([jnp.full((E,), scale, jnp.float32),
                                 jnp.ones((2 * E,), jnp.float32)])
    w_qkv = (params["in_proj_w"] * col_scale[None, :]).astype(jnp.bfloat16)
    b_qkv = params["in_proj_b"] * col_scale

    # other weights to bf16 once (MXU operands); biases / LN params stay f32
    w_o = params["out_proj_w"].astype(jnp.bfloat16)
    w1 = params["linear1_w"].astype(jnp.bfloat16)
    w2 = params["linear2_w"].astype(jnp.bfloat16)

    # ---- QKV projection: bf16 activation tiles (half HBM traffic on the reused operand) ----
    qkv = linear(x.astype(jnp.bfloat16), w_qkv, b_qkv, out_dtype=jnp.bfloat16)   # (M, 3E)
    qkv = qkv.reshape(B, S, 3 * E)

    # tiny (B,1,S) additive key-padding bias; the (B,S,S) bias matrix is never built in HBM
    bias = jnp.where(key_padding_mask, -1e30, 0.0).astype(jnp.float32)[:, None, :]

    # ---- fused attention + out_proj + residual + LayerNorm1 ----
    y1, attn_w = attention_block(qkv, bias, xb, w_o, params["out_proj_b"],
                                 params["norm1_g"], params["norm1_b"],
                                 nhead=nhead, eps=eps)

    # ---- fused FFN + residual + LayerNorm2 (FF intermediate stays in VMEM) ----
    y2 = ffn_block(y1.reshape(M, E), w1, params["linear1_b"], w2, params["linear2_b"],
                   params["norm2_g"], params["norm2_b"], eps=eps)

    out = jnp.transpose(y2.reshape(B, S, E), (1, 0, 2))
    return out, attn_w


# ---------------------------------------------------------------------------
# main
# ---------------------------------------------------------------------------

if __name__ == "__main__":
    # small shapes consistent with the module: embed_dim divisible by nhead=4
    S, B, E, H, FF = 8, 2, 32, 4, 64

    key = jax.random.PRNGKey(0)
    k_src, k_par = jax.random.split(key)

    src = jax.random.normal(k_src, (S, B, E), jnp.float32)
    key_padding_mask = jnp.zeros((B, S), dtype=bool).at[1, 6:].set(True)

    params = init_params(k_par, E, H, FF)

    out, attn_w = transformer_encoder_layer(src, key_padding_mask, params, H)
    out = jax.block_until_ready(out)
    attn_w = jax.block_until_ready(attn_w)

    assert out.shape == (S, B, E)
    assert attn_w.shape == (B, S, S)
    assert bool(jnp.all(jnp.isfinite(out)))
    # masked key columns must have ~zero averaged attention weight
    assert bool(jnp.all(attn_w[1, :, 6:] < 1e-6))
    # attention weight rows must sum to ~1
    assert bool(jnp.all(jnp.abs(jnp.sum(attn_w, axis=-1) - 1.0) < 1e-2))

    print("KERNEL_OK")
</pallas_src>

<mosaic_0001>
module attributes {stable_mosaic.version = 11 : i64} {
  func.func @_matmul_bias_kernel(%arg0: i32, %arg1: i32, %arg2: i32, %arg3: memref<16x32xbf16, #tpu.memory_space<vmem>>, %arg4: memref<32x96xbf16, #tpu.memory_space<vmem>>, %arg5: memref<1x96xf32, #tpu.memory_space<vmem>>, %arg6: memref<16x96xbf16, #tpu.memory_space<vmem>>, %arg7: memref<16x96xf32, #tpu.memory_space<vmem>>) attributes {dimension_semantics = [#tpu.dimension_semantics<parallel>, #tpu.dimension_semantics<parallel>, #tpu.dimension_semantics<arbitrary>], iteration_bounds = array<i64: 1, 1, 1>, scalar_prefetch = 0 : i64, scratch_operands = 1 : i64, tpu.core_type = #tpu.core_type<tc>, window_params = [{transform_indices = @transform_0, window_bounds = array<i64: 16, 32>}, {transform_indices = @transform_1, window_bounds = array<i64: 32, 96>}, {transform_indices = @transform_2, window_bounds = array<i64: 1, 96>}, {transform_indices = @transform_3, window_bounds = array<i64: 16, 96>}]} {
    %c0_i32 = arith.constant 0 : i32
    %0 = arith.cmpi eq, %arg2, %c0_i32 : i32
    %1 = arith.extui %0 : i1 to i32
    %c0_i32_0 = arith.constant 0 : i32
    %2 = arith.cmpi ne, %1, %c0_i32_0 : i32
    scf.if %2 {
      %cst_10 = arith.constant 0.000000e+00 : f32
      %12 = vector.broadcast %cst_10 : f32 to vector<16x96xf32>
      %c0_11 = arith.constant 0 : index
      %c0_12 = arith.constant 0 : index
      %13 = vector.load %arg7[%c0_11, %c0_12] : memref<16x96xf32, #tpu.memory_space<vmem>>, vector<16x96xf32>
      tpu.vector_store %arg7[%c0_11, %c0_12], %12 {strides = array<i32>} : memref<16x96xf32, #tpu.memory_space<vmem>>, vector<16x96xf32>,
    } else {
    }
    %c0 = arith.constant 0 : index
    %c0_1 = arith.constant 0 : index
    %3 = vector.load %arg7[%c0, %c0_1] : memref<16x96xf32, #tpu.memory_space<vmem>>, vector<16x96xf32>
    %c0_2 = arith.constant 0 : index
    %c0_3 = arith.constant 0 : index
    %4 = vector.load %arg3[%c0_2, %c0_3] : memref<16x32xbf16, #tpu.memory_space<vmem>>, vector<16x32xbf16>
    %c0_4 = arith.constant 0 : index
    %c0_5 = arith.constant 0 : index
    %5 = vector.load %arg4[%c0_4, %c0_5] : memref<32x96xbf16, #tpu.memory_space<vmem>>, vector<32x96xbf16>
    %cst = arith.constant dense<0.000000e+00> : vector<16x96xf32>
    %6 = tpu.matmul %4, %5, %cst {dimension_numbers = #tpu.dot_dimension_numbers<[1], [0], [0], [1], [0, 0, 1, 1], [], []>} : vector<16x32xbf16>, vector<32x96xbf16>, vector<16x96xf32> -> vector<16x96xf32>
    %7 = arith.addf %3, %6 : vector<16x96xf32>
    %c0_6 = arith.constant 0 : index
    %c0_7 = arith.constant 0 : index
    %8 = vector.load %arg7[%c0_6, %c0_7] : memref<16x96xf32, #tpu.memory_space<vmem>>, vector<16x96xf32>
    tpu.vector_store %arg7[%c0_6, %c0_7], %7 {strides = array<i32>} : memref<16x96xf32, #tpu.memory_space<vmem>>, vector<16x96xf32>,
    %c0_i32_8 = arith.constant 0 : i32
    %9 = arith.cmpi eq, %arg2, %c0_i32_8 : i32
    %10 = arith.extui %9 : i1 to i32
    %c0_i32_9 = arith.constant 0 : i32
    %11 = arith.cmpi ne, %10, %c0_i32_9 : i32
    scf.if %11 {
      %c0_10 = arith.constant 0 : index
      %c0_11 = arith.constant 0 : index
      %12 = vector.load %arg7[%c0_10, %c0_11] : memref<16x96xf32, #tpu.memory_space<vmem>>, vector<16x96xf32>
      %c0_12 = arith.constant 0 : index
      %c0_13 = arith.constant 0 : index
      %13 = vector.load %arg5[%c0_12, %c0_13] : memref<1x96xf32, #tpu.memory_space<vmem>>, vector<1x96xf32>
      %14 = vector.broadcast %13 : vector<1x96xf32> to vector<16x96xf32>
      %15 = arith.addf %12, %14 : vector<16x96xf32>
      %16 = arith.truncf %15 : vector<16x96xf32> to vector<16x96xbf16>
      %c0_14 = arith.constant 0 : index
      %c0_15 = arith.constant 0 : index
      %17 = vector.load %arg6[%c0_14, %c0_15] : memref<16x96xbf16, #tpu.memory_space<vmem>>, vector<16x96xbf16>
      tpu.vector_store %arg6[%c0_14, %c0_15], %16 {strides = array<i32>} : memref<16x96xbf16, #tpu.memory_space<vmem>>, vector<16x96xbf16>,
    } else {
    }
    return
  }
  func.func @transform_0(%arg0: i32, %arg1: i32, %arg2: i32) -> (i32, i32) {
    %c0_i32 = arith.constant 0 : i32
    return %arg0, %arg2 : i32, i32
  }
  func.func @transform_1(%arg0: i32, %arg1: i32, %arg2: i32) -> (i32, i32) {
    %c0_i32 = arith.constant 0 : i32
    return %arg2, %arg1 : i32, i32
  }
  func.func @transform_2(%arg0: i32, %arg1: i32, %arg2: i32) -> (i32, i32) {
    %c0_i32 = arith.constant 0 : i32
    %c0_i32_0 = arith.constant 0 : i32
    return %c0_i32, %arg1 : i32, i32
  }
  func.func @transform_3(%arg0: i32, %arg1: i32, %arg2: i32) -> (i32, i32) {
    %c0_i32 = arith.constant 0 : i32
    return %arg0, %arg1 : i32, i32
  }
}

</mosaic_0001>

<llo_original>
// kernel: tpu_custom_call.1
$region0: #{tpu_custom_call.1}
  #allocation0 [shape = 'u32[]', space=smem, size = 0x4, offset = 0x4, fixed_abs, tag = 'smem constant byte address 0x4 - core index']
  #allocation1 [shape = 'u32[72,128]{1,0:T(1,128)}', space=vmem, size = 0x9000, scoped, tag = 'internal scratch']
  #allocation2 [shape = 'f32[16,96]{1,0:T(8,128)}', space=vmem, size = 0x2000, scoped, tag = 'scratch operand']
  %s0 = inlined_call_operand.hbm [shape: bf16[16,32], index: 0, kind: input, shape index: {}]
  %s1 = inlined_call_operand.hbm [shape: bf16[32,96], index: 1, kind: input, shape index: {}]
  %s2 = inlined_call_operand.vmem [shape: f32[1,96], index: 2, kind: input, shape index: {}]
  %s3 = inlined_call_operand.hbm [shape: bf16[16,96], index: 3, kind: output, shape index: {}]
  %s4 = sld [smem:[#allocation0]]
  $region38: #{tpu_custom_call.1} parent=0
    _
  %s6 = ssub.s32 1, %s4
  %s7 = scalar_select 0, %s6, %s4
  $region1: #{tpu_custom_call.1} parent=0
    #allocation3 [shape = 'u8[4096]{0}', space=vmem, size = 0x1000, scoped, tag = 'input window, operand 0, single buffered']
    #allocation4 [shape = 's32[1]{0}', space=sflag, size = 0x4, scoped, tag = 'scoped memory for tpu_custom_call.1']
    #allocation5 [shape = 's32[1]{0}', space=sflag, size = 0x4, scoped, tag = 'scoped memory for tpu_custom_call.1']
    #allocation6 [shape = 'u8[8192]{0}', space=vmem, size = 0x2000, scoped, tag = 'input window, operand 1, single buffered']
    #allocation7 [shape = 's32[1]{0}', space=sflag, size = 0x4, scoped, tag = 'scoped memory for tpu_custom_call.1']
    #allocation8 [shape = 'u8[4096]{0}', space=vmem, size = 0x1000, scoped, tag = 'output window, operand 0, single buffered']
    %8 = vsyncpa [#allocation4], 0
    %9 = vsyncpa [#allocation7], 0
    %10 = vsyncpa [#allocation5], 0
    // Predicated region
    $region2: #{tpu_custom_call.1} parent=1 // pred_check
      _
    $region3: #{tpu_custom_call.1} parent=1 // pred_check_branch
      %12 = sbr.rel (0) target = $region5
    $region4: #{tpu_custom_call.1} parent=1 // pred_region
      %14 = vsyncadd [#allocation4], 0
      %s15 = sshll.u32 %s0, 4
      %s16 = int_to_ptr.hbm [resolvable:$true] %s15
      %s17 = sshll.u32 [#allocation3], 4
      %s18 = int_to_ptr.vmem [resolvable:$true] %s17
      %23 = dma.hbm_to_vmem [thread:$0]  %s16, 128, %s18, [#allocation4], 64, 64, 4
    $region5: #{tpu_custom_call.1} parent=1 // pred_fallthru
      _
    // Predicated region
    $region6: #{tpu_custom_call.1} parent=1 // pred_check
      _
    $region7: #{tpu_custom_call.1} parent=1 // pred_check_branch
      %25 = sbr.rel (0) target = $region9
    $region8: #{tpu_custom_call.1} parent=1 // pred_region
      %27 = vsyncadd [#allocation7], 0
      %s28 = sshll.u32 %s1, 4
      %s29 = int_to_ptr.hbm [resolvable:$true] %s28
      %s30 = sshll.u32 [#allocation6], 4
      %s31 = int_to_ptr.vmem [resolvable:$true] %s30
      %36 = dma.hbm_to_vmem [thread:$0]  %s29, 256, %s31, [#allocation7], 64, 64, 4
    $region9: #{tpu_custom_call.1} parent=1 // pred_fallthru
      _
    // Predicated region
    $region10: #{tpu_custom_call.1} parent=1 // pred_check
      _
    $region11: #{tpu_custom_call.1} parent=1 // pred_check_branch
      %38 = sbr.rel (0) target = $region13
    $region12: #{tpu_custom_call.1} parent=1 // pred_region
      _
    $region13: #{tpu_custom_call.1} parent=1 // pred_fallthru
      _
    // Predicated region
    $region14: #{tpu_custom_call.1} parent=1 // pred_check
      _
    $region15: #{tpu_custom_call.1} parent=1 // pred_check_branch
      %40 = sbr.rel (0) target = $region17
    $region16: #{tpu_custom_call.1} parent=1 // pred_region
      %42 = dma.done [#allocation4], 128
    $region17: #{tpu_custom_call.1} parent=1 // pred_fallthru
      _
    // Predicated region
    $region18: #{tpu_custom_call.1} parent=1 // pred_check
      _
    $region19: #{tpu_custom_call.1} parent=1 // pred_check_branch
      %44 = sbr.rel (0) target = $region21
    $region20: #{tpu_custom_call.1} parent=1 // pred_region
      %46 = dma.done [#allocation7], 256
    $region21: #{tpu_custom_call.1} parent=1 // pred_fallthru
      _
    %p48 = scmp.eq.s32.totalorder 0, 0
    // Predicated region
    $region22: #{tpu_custom_call.1} parent=1 // pred_check
      %p49 = pneg %p48
    $region23: #{tpu_custom_call.1} parent=1 // pred_check_branch
      %51 = sbr.rel (%p49) target = $region25
    $region24: #{tpu_custom_call.1} parent=1 // pred_region
      %vm52 = vcmask 785408
      %53 = vst.msk [vmem:[#allocation2] sm:$0xff] %vm52, 0.0
      %54 = vst.msk [vmem:[#allocation2 + $0x8] sm:$0xff] %vm52, 0.0
    $region25: #{tpu_custom_call.1} parent=1 // pred_fallthru
      _
    %v55 = vld [vmem:[#allocation2] sm:$0xff]
    %v56 = vld [vmem:[#allocation2 + $0x8] sm:$0xff]
    %v57 = vld [vmem:[#allocation3] sm:$0xf]
    %v58 = vld [vmem:[#allocation3 + $0x4] sm:$0xf]
    %v59 = vld [vmem:[#allocation6] sm:$0xf]
    %v60 = vld [vmem:[#allocation6 + $0x4] sm:$0xf]
    %v61 = vld [vmem:[#allocation6 + $0x8] sm:$0xf]
    %v62 = vld [vmem:[#allocation6 + $0xc] sm:$0xf]
    %v65 = vunpack.c.l.b16 %v57
    %v66 = vunpack.c.l.b16 %v58
    %v67 = vpack.c.b16 %v66, %v65
    %v72 = vunpack.c.l.b16 %v59
    %v73 = vunpack.c.l.b16 %v60
    %v74 = vunpack.c.l.b16 %v61
    %v75 = vunpack.c.l.b16 %v62
    %v76 = vpack.c.b16 %v73, %v72
    %v77 = vpack.c.b16 %v75, %v74
    %vm80 = vcmask 261120
    %v82 = vsel %vm80, %v67, 0
    %84 = vmatpush.bf16.msra.mxu0 0
    %85 = vmatpush.bf16.msra.mxu0 0
    %86 = vmatpush.bf16.msra.mxu0 0
    %87 = vmatpush.bf16.msra.mxu0 0
    %88 = vmatpush.bf16.msra.mxu0 0
    %89 = vmatpush.bf16.msra.mxu0 0
    %90 = vmatpush.bf16.msra.mxu0 %v77
    %91 = vmatpush.bf16.msra.mxu0 %v76
    %92 = vmatmul.bf16.gmra.mxu0 %v82
    %v93 = vpop.f32.mrf.mxu0
    %v94 = vadd.f32 0.0, %v93
    %v95 = vpop.f32.mrf.mxu0
    %v96 = vadd.f32 0.0, %v95
    %97 = vdwg.mxu0
    %v98 = vadd.f32 %v55, %v94
    %v99 = vadd.f32 %v56, %v96
    %vm100 = vcmask 785408
    %101 = vst.msk [vmem:[#allocation2] sm:$0xff] %vm100, %v98
    %102 = vst.msk [vmem:[#allocation2 + $0x8] sm:$0xff] %vm100, %v99
    // Predicated region
    $region26: #{tpu_custom_call.1} parent=1 // pred_check
      %p103 = pneg %p48
    $region27: #{tpu_custom_call.1} parent=1 // pred_check_branch
      %105 = sbr.rel (%p103) target = $region29
    $region28: #{tpu_custom_call.1} parent=1 // pred_region
      %v106 = vld [vmem:[#allocation2] sm:$0xff]
      %v107 = vld [vmem:[#allocation2 + $0x8] sm:$0xff]
      %v108 = vld [vmem:[%s2] sm:$0x1]
      %v110 = vperm.slane %v108, 0
      %v112 = vadd.f32 %v106, %v110
      %v113 = vadd.f32 %v107, %v110
      %v114 = vpack.c.bf16 %v112, %v112
      %v115 = vpack.c.bf16 %v113, %v113
      %vm116 = vcmask 781312
      %117 = vst.msk [vmem:[#allocation8] sm:$0xf] %vm116, %v114
      %118 = vst.msk [vmem:[#allocation8 + $0x4] sm:$0xf] %vm116, %v115
    $region29: #{tpu_custom_call.1} parent=1 // pred_fallthru
      _
    // Predicated region
    $region30: #{tpu_custom_call.1} parent=1 // pred_check
      _
    $region31: #{tpu_custom_call.1} parent=1 // pred_check_branch
      %120 = sbr.rel (0) target = $region33
    $region32: #{tpu_custom_call.1} parent=1 // pred_region
      %122 = vsyncadd [#allocation5], 0
      %s123 = sshll.u32 [#allocation8], 4
      %s124 = int_to_ptr.vmem [resolvable:$true] %s123
      %s125 = sshll.u32 %s3, 4
      %s126 = int_to_ptr.hbm [resolvable:$true] %s125
      %131 = dma.vmem_to_hbm [thread:$0]  %s124, 128, %s126, [#allocation5], 64, 64, 4
    $region33: #{tpu_custom_call.1} parent=1 // pred_fallthru
      _
    // Predicated region
    $region34: #{tpu_custom_call.1} parent=1 // pred_check
      _
    $region35: #{tpu_custom_call.1} parent=1 // pred_check_branch
      %133 = sbr.rel (0) target = $region37
    $region36: #{tpu_custom_call.1} parent=1 // pred_region
      %135 = dma.done [#allocation5], 128
    $region37: #{tpu_custom_call.1} parent=1 // pred_fallthru
      _
    %136 = vsyncpa [#allocation4], 1
    %137 = vsyncpa [#allocation7], 1
    %138 = vsyncpa [#allocation5], 1

</llo_original>
